<compile_context>
chip_gen: v6e
topology: v6e:2x2x1
jax: 0.10.0
libtpu: 0.0.40
codegen_flags: <defaults>
</compile_context>

<pallas_src>
import functools

import jax
import jax.numpy as jnp
from jax.experimental import pallas as pl
from jax.experimental.pallas import tpu as pltpu

LANE = 128  # TPU vreg lane width


def _round_up(n, m):
    return ((n + m - 1) // m) * m


def _mlp_fused_kernel(*refs, n_layers, bias_offsets, out_pads):
    """refs = (x_ref, bias_slab_ref, w_0, ..., w_{L-1}, o_ref).

    Activations stay in vregs/VMEM; weights are resident across batch tiles; the only
    store is the lane-dense (multiple-of-128 wide) output tile.
    """
    x_ref = refs[0]
    bias_ref = refs[1]
    w_refs = refs[2:2 + n_layers]
    o_ref = refs[2 + n_layers]

    h = x_ref[...]  # (TB, Din) f32
    for li in range(n_layers):
        w = w_refs[li][...]  # (Kin_pad, Kout_pad) bf16, VMEM-resident
        # Static slice into the packed bias slab (offsets/sizes are Python ints).
        b = bias_ref[:, pl.ds(bias_offsets[li], out_pads[li])]  # (1, Kout_pad) f32
        acc = jnp.dot(h.astype(jnp.bfloat16), w, preferred_element_type=jnp.float32)
        h = acc + b  # f32 bias-add
        if li < n_layers - 1:
            h = jnp.maximum(h, 0.0)  # ReLU in f32; dropout is identity in eval mode
    o_ref[...] = h.astype(o_ref.dtype)


def prepare_nn_mapper(params):
    """One-time packing (call at init, NOT per forward).

    params: list of (W, b) with W shape (in_dim, out_dim) (transposed vs. torch (out,in)).
    Pads every layer's out-dim (and the next layer's in-dim) to a 128-lane multiple with
    zeros, casts weights to bf16, and packs all biases into one f32 slab.
    """
    input_dim = params[0][0].shape[0]
    out_dims = [w.shape[1] for (w, _) in params]
    out_pads = [_round_up(d, LANE) for d in out_dims]
    in_pads = [input_dim] + out_pads[:-1]  # x itself is left unpadded (first K = input_dim)

    w_padded = []
    bias_chunks = []
    for li, (w, b) in enumerate(params):
        kin, kout = w.shape
        wp = jnp.pad(w, ((0, in_pads[li] - kin), (0, out_pads[li] - kout)))
        w_padded.append(wp.astype(jnp.bfloat16))
        bias_chunks.append(jnp.pad(b, (0, out_pads[li] - kout)).astype(jnp.float32))

    bias_slab = jnp.concatenate(bias_chunks)[None, :]  # (1, sum(out_pads)) f32
    bias_offsets, off = [], 0
    for p in out_pads:
        bias_offsets.append(off)
        off += p

    return {
        "weights": tuple(w_padded),
        "bias_slab": bias_slab,
        "bias_offsets": tuple(bias_offsets),
        "out_pads": tuple(out_pads),
        "input_dim": int(input_dim),
        "output_dim": int(out_dims[-1]),
    }


def _pick_batch_tile(batch):
    for tb in (512, 256, 128, 64, 32, 16, 8):
        if batch % tb == 0:
            return tb
    return batch  # block == full array extent is always legal


def nn_mapper_forward(packed, x):
    """Fused forward pass. x: (B, input_dim) f32 -> (B, output_dim) f32."""
    weights = packed["weights"]
    bias_slab = packed["bias_slab"]
    n_layers = len(weights)
    B, din = x.shape
    assert din == packed["input_dim"]
    out_pad = packed["out_pads"][-1]
    out_dim = packed["output_dim"]

    TB = _pick_batch_tile(B)
    grid = (pl.cdiv(B, TB),)

    # x / out are batch-tiled (pipelined); weights & bias slab have constant index maps
    # so they are DMA'd once and stay resident across the whole batch grid.
    in_specs = [
        pl.BlockSpec((TB, din), lambda i: (i, 0)),
        pl.BlockSpec(bias_slab.shape, lambda i: (0, 0)),
    ] + [pl.BlockSpec(w.shape, lambda i: (0, 0)) for w in weights]
    out_spec = pl.BlockSpec((TB, out_pad), lambda i: (i, 0))

    flops = 2 * B * sum(w.shape[0] * w.shape[1] for w in weights)
    bytes_accessed = int(
        x.size * x.dtype.itemsize
        + sum(w.size * w.dtype.itemsize for w in weights)
        + bias_slab.size * bias_slab.dtype.itemsize
        + B * out_pad * 4
    )

    # Raise the scoped-VMEM limit only when the resident weights + double-buffered
    # x/out tiles actually need it (v5e default 16 MiB, v6e/v7x 32 MiB).
    resident_bytes = (
        sum(w.size * w.dtype.itemsize for w in weights)
        + bias_slab.size * bias_slab.dtype.itemsize
        + 2 * 2 * (TB * din * 4 + TB * out_pad * 4)
        + 4 * TB * max(packed["out_pads"]) * 4
    )
    vmem_limit = None if resident_bytes < (16 << 20) else min(
        int(resident_bytes * 3 // 2), 100 << 20)

    kernel = functools.partial(
        _mlp_fused_kernel,
        n_layers=n_layers,
        bias_offsets=packed["bias_offsets"],
        out_pads=packed["out_pads"],
    )

    out_padded = pl.pallas_call(
        kernel,
        out_shape=jax.ShapeDtypeStruct((B, out_pad), jnp.float32),
        grid=grid,
        in_specs=in_specs,
        out_specs=out_spec,
        compiler_params=pltpu.CompilerParams(
            dimension_semantics=("parallel",),
            vmem_limit_bytes=vmem_limit,
        ),
        cost_estimate=pl.CostEstimate(
            flops=flops, transcendentals=0, bytes_accessed=bytes_accessed
        ),
    )(x, bias_slab, *weights)

    if out_dim == out_pad:
        return out_padded
    return out_padded[:, :out_dim]


def init_nn_mapper_params(key, input_dim, hidden_dims, output_dim=None):
    """Deterministic parameter init mirroring the PyTorch module's layer shapes."""
    output_dim = output_dim if output_dim else input_dim
    hidden_layer_cnt = len(hidden_dims)
    params = []
    for hli in range(hidden_layer_cnt + 1):
        in_dim = input_dim if hli == 0 else hidden_dims[hli - 1]
        out_dim = output_dim if hli == hidden_layer_cnt else hidden_dims[hli]
        key, kw, kb = jax.random.split(key, 3)
        bound = 1.0 / jnp.sqrt(jnp.float32(in_dim))
        w = jax.random.uniform(kw, (in_dim, out_dim), jnp.float32, -bound, bound)
        b = jax.random.uniform(kb, (out_dim,), jnp.float32, -bound, bound)
        params.append((w, b))
    return params


if __name__ == "__main__":
    key = jax.random.PRNGKey(0)
    key, kx, kp = jax.random.split(key, 3)

    batch = 24          # exercises the batch grid (TB=8 -> grid=(3,))
    input_dim = 32
    hidden_dims = [64, 48]
    output_dim = 16

    x = jax.random.normal(kx, (batch, input_dim), jnp.float32)
    params = init_nn_mapper_params(kp, input_dim, hidden_dims, output_dim)
    packed = prepare_nn_mapper(params)   # one-time padding / bf16 cast / bias packing

    out = nn_mapper_forward(packed, x)
    out = jax.block_until_ready(out)

    # Plain-JAX reference doing the SAME math (bf16 operands, f32 accumulation,
    # eval-mode dropout = identity).
    ref = x
    for i, (w, b) in enumerate(params):
        ref = jnp.dot(ref.astype(jnp.bfloat16), w.astype(jnp.bfloat16),
                      preferred_element_type=jnp.float32) + b
        if i < len(params) - 1:
            ref = jnp.maximum(ref, 0.0)

    assert out.shape == (batch, output_dim)
    assert jnp.allclose(out, ref, atol=2e-3, rtol=2e-3), float(jnp.max(jnp.abs(out - ref)))

    print("KERNEL_OK")
</pallas_src>

<mosaic_0001>
module attributes {stable_mosaic.version = 11 : i64} {
  func.func @_mlp_fused_kernel(%arg0: i32, %arg1: memref<8x32xf32, #tpu.memory_space<vmem>>, %arg2: memref<1x384xf32, #tpu.memory_space<vmem>>, %arg3: memref<32x128xbf16, #tpu.memory_space<vmem>>, %arg4: memref<128x128xbf16, #tpu.memory_space<vmem>>, %arg5: memref<128x128xbf16, #tpu.memory_space<vmem>>, %arg6: memref<8x128xf32, #tpu.memory_space<vmem>>) attributes {dimension_semantics = [#tpu.dimension_semantics<parallel>], iteration_bounds = array<i64: 3>, scalar_prefetch = 0 : i64, scratch_operands = 0 : i64, tpu.core_type = #tpu.core_type<tc>, window_params = [{transform_indices = @transform_0, window_bounds = array<i64: 8, 32>}, {pipeline_mode = #tpu.pipeline_mode<synchronous>, transform_indices = @transform_1, window_bounds = array<i64: 1, 384>}, {pipeline_mode = #tpu.pipeline_mode<synchronous>, transform_indices = @transform_2, window_bounds = array<i64: 32, 128>}, {pipeline_mode = #tpu.pipeline_mode<synchronous>, transform_indices = @transform_3, window_bounds = array<i64: 128, 128>}, {pipeline_mode = #tpu.pipeline_mode<synchronous>, transform_indices = @transform_4, window_bounds = array<i64: 128, 128>}, {transform_indices = @transform_5, window_bounds = array<i64: 8, 128>}]} {
    %c0 = arith.constant 0 : index
    %c0_0 = arith.constant 0 : index
    %0 = vector.load %arg1[%c0, %c0_0] : memref<8x32xf32, #tpu.memory_space<vmem>>, vector<8x32xf32>
    %c0_1 = arith.constant 0 : index
    %c0_2 = arith.constant 0 : index
    %1 = vector.load %arg3[%c0_1, %c0_2] : memref<32x128xbf16, #tpu.memory_space<vmem>>, vector<32x128xbf16>
    %c0_3 = arith.constant 0 : index
    %c0_4 = arith.constant 0 : index
    %2 = vector.load %arg2[%c0_3, %c0_4] : memref<1x384xf32, #tpu.memory_space<vmem>>, vector<1x128xf32>
    %3 = arith.truncf %0 : vector<8x32xf32> to vector<8x32xbf16>
    %cst = arith.constant dense<0.000000e+00> : vector<8x128xf32>
    %4 = tpu.matmul %3, %1, %cst {dimension_numbers = #tpu.dot_dimension_numbers<[1], [0], [0], [1], [0, 0, 1, 1], [], []>} : vector<8x32xbf16>, vector<32x128xbf16>, vector<8x128xf32> -> vector<8x128xf32>
    %5 = vector.broadcast %2 : vector<1x128xf32> to vector<8x128xf32>
    %6 = arith.addf %4, %5 : vector<8x128xf32>
    %cst_5 = arith.constant 0.000000e+00 : f32
    %7 = vector.broadcast %cst_5 : f32 to vector<8x128xf32>
    %8 = arith.maximumf %6, %7 : vector<8x128xf32>
    %c0_6 = arith.constant 0 : index
    %c0_7 = arith.constant 0 : index
    %9 = vector.load %arg4[%c0_6, %c0_7] : memref<128x128xbf16, #tpu.memory_space<vmem>>, vector<128x128xbf16>
    %c0_8 = arith.constant 0 : index
    %c128 = arith.constant 128 : index
    %10 = vector.load %arg2[%c0_8, %c128] : memref<1x384xf32, #tpu.memory_space<vmem>>, vector<1x128xf32>
    %11 = arith.truncf %8 : vector<8x128xf32> to vector<8x128xbf16>
    %cst_9 = arith.constant dense<0.000000e+00> : vector<8x128xf32>
    %12 = tpu.matmul %11, %9, %cst_9 {dimension_numbers = #tpu.dot_dimension_numbers<[1], [0], [0], [1], [0, 0, 1, 1], [], []>} : vector<8x128xbf16>, vector<128x128xbf16>, vector<8x128xf32> -> vector<8x128xf32>
    %13 = vector.broadcast %10 : vector<1x128xf32> to vector<8x128xf32>
    %14 = arith.addf %12, %13 : vector<8x128xf32>
    %cst_10 = arith.constant 0.000000e+00 : f32
    %15 = vector.broadcast %cst_10 : f32 to vector<8x128xf32>
    %16 = arith.maximumf %14, %15 : vector<8x128xf32>
    %c0_11 = arith.constant 0 : index
    %c0_12 = arith.constant 0 : index
    %17 = vector.load %arg5[%c0_11, %c0_12] : memref<128x128xbf16, #tpu.memory_space<vmem>>, vector<128x128xbf16>
    %c0_13 = arith.constant 0 : index
    %c256 = arith.constant 256 : index
    %18 = vector.load %arg2[%c0_13, %c256] : memref<1x384xf32, #tpu.memory_space<vmem>>, vector<1x128xf32>
    %19 = arith.truncf %16 : vector<8x128xf32> to vector<8x128xbf16>
    %cst_14 = arith.constant dense<0.000000e+00> : vector<8x128xf32>
    %20 = tpu.matmul %19, %17, %cst_14 {dimension_numbers = #tpu.dot_dimension_numbers<[1], [0], [0], [1], [0, 0, 1, 1], [], []>} : vector<8x128xbf16>, vector<128x128xbf16>, vector<8x128xf32> -> vector<8x128xf32>
    %21 = vector.broadcast %18 : vector<1x128xf32> to vector<8x128xf32>
    %22 = arith.addf %20, %21 : vector<8x128xf32>
    %c0_15 = arith.constant 0 : index
    %c0_16 = arith.constant 0 : index
    %23 = vector.load %arg6[%c0_15, %c0_16] : memref<8x128xf32, #tpu.memory_space<vmem>>, vector<8x128xf32>
    tpu.vector_store %arg6[%c0_15, %c0_16], %22 {strides = array<i32>} : memref<8x128xf32, #tpu.memory_space<vmem>>, vector<8x128xf32>,
    return
  }
  func.func @transform_0(%arg0: i32) -> (i32, i32) {
    %c0_i32 = arith.constant 0 : i32
    %c0_i32_0 = arith.constant 0 : i32
    return %arg0, %c0_i32 : i32, i32
  }
  func.func @transform_1(%arg0: i32) -> (i32, i32) {
    %c0_i32 = arith.constant 0 : i32
    %c0_i32_0 = arith.constant 0 : i32
    %c0_i32_1 = arith.constant 0 : i32
    return %c0_i32, %c0_i32_0 : i32, i32
  }
  func.func @transform_2(%arg0: i32) -> (i32, i32) {
    %c0_i32 = arith.constant 0 : i32
    %c0_i32_0 = arith.constant 0 : i32
    %c0_i32_1 = arith.constant 0 : i32
    return %c0_i32, %c0_i32_0 : i32, i32
  }
  func.func @transform_3(%arg0: i32) -> (i32, i32) {
    %c0_i32 = arith.constant 0 : i32
    %c0_i32_0 = arith.constant 0 : i32
    %c0_i32_1 = arith.constant 0 : i32
    return %c0_i32, %c0_i32_0 : i32, i32
  }
  func.func @transform_4(%arg0: i32) -> (i32, i32) {
    %c0_i32 = arith.constant 0 : i32
    %c0_i32_0 = arith.constant 0 : i32
    %c0_i32_1 = arith.constant 0 : i32
    return %c0_i32, %c0_i32_0 : i32, i32
  }
  func.func @transform_5(%arg0: i32) -> (i32, i32) {
    %c0_i32 = arith.constant 0 : i32
    %c0_i32_0 = arith.constant 0 : i32
    return %arg0, %c0_i32 : i32, i32
  }
}

</mosaic_0001>

<llo_original>
// kernel: tpu_custom_call.1
$region0: #{tpu_custom_call.1}
  #allocation0 [shape = 'u32[]', space=smem, size = 0x4, offset = 0x4, fixed_abs, tag = 'smem constant byte address 0x4 - core index']
  #allocation1 [shape = 'u32[144,128]{1,0:T(1,128)}', space=vmem, size = 0x12000, scoped, tag = 'internal scratch']
  %s0 = inlined_call_operand.hbm [shape: f32[24,32], index: 0, kind: input, shape index: {}]
  %s1 = inlined_call_operand.hbm [shape: f32[1,384], index: 1, kind: input, shape index: {}]
  %s2 = inlined_call_operand.hbm [shape: bf16[32,128], index: 2, kind: input, shape index: {}]
  %s3 = inlined_call_operand.hbm [shape: bf16[128,128], index: 3, kind: input, shape index: {}]
  %s4 = inlined_call_operand.hbm [shape: bf16[128,128], index: 4, kind: input, shape index: {}]
  %s5 = inlined_call_operand.hbm [shape: f32[24,128], index: 5, kind: output, shape index: {}]
  %s6 = sld [smem:[#allocation0]]
  $region73: #{tpu_custom_call.1} parent=0
    _
  %s8 = ssub.s32 1, %s6
  %s9 = scalar_select 0, %s8, %s6
  $region1: #{tpu_custom_call.1} parent=0
    #allocation2 [shape = 'u8[8192]{0}', space=vmem, size = 0x2000, scoped, tag = 'input window, operand 0']
    #allocation3 [shape = 's32[2]{0}', space=sflag, size = 0x8, scoped, tag = 'scoped memory for tpu_custom_call.1']
    #allocation4 [shape = 's32[2]{0}', space=sflag, size = 0x8, scoped, tag = 'scoped memory for tpu_custom_call.1']
    #allocation5 [shape = 'u8[1536]{0}', space=vmem, size = 0x800, scoped, tag = 'input window, operand 1, single buffered']
    #allocation6 [shape = 's32[1]{0}', space=sflag, size = 0x4, scoped, tag = 'scoped memory for tpu_custom_call.1']
    #allocation7 [shape = 'u8[8192]{0}', space=vmem, size = 0x2000, scoped, tag = 'input window, operand 2, single buffered']
    #allocation8 [shape = 'u8[32768]{0}', space=vmem, size = 0x8000, scoped, tag = 'input window, operand 3, single buffered']
    #allocation9 [shape = 's32[1]{0}', space=sflag, size = 0x4, scoped, tag = 'scoped memory for tpu_custom_call.1']
    #allocation10 [shape = 'u8[32768]{0}', space=vmem, size = 0x8000, scoped, tag = 'input window, operand 4, single buffered']
    #allocation11 [shape = 'u8[8192]{0}', space=vmem, size = 0x2000, scoped, tag = 'output window, operand 0']
    %10 = vsyncpa [#allocation3], 0
    %s11 = scalar_lea.sflag [#allocation3], 1
    %12 = vsyncpa %s11, 0
    %13 = vsyncpa [#allocation6], 0
    %14 = vsyncpa [#allocation9], 0
    %15 = vsyncpa [#allocation4], 0
    %s16 = scalar_lea.sflag [#allocation4], 1
    %17 = vsyncpa %s16, 0
    loop: start=0, step=1, limit=5
    $region2: #{tpu_custom_call.1} parent=1 // loop_pre_header
      _
    $region3: #{tpu_custom_call.1} parent=1 // loop_header
      %s19 = sphi 0, %s23
      %p20 = scmp.ge.s32.totalorder %s19, 5
      %s29 = sphi 0, %s31
      %s32 = sphi 0, %s29
      %s33 = sphi 0, %s32
      %s49 = sphi 0, %s33
      %s53 = sphi 0, %s53
      %s55 = sphi 0, %s53
      %s56 = sphi 0, %s55
      %s70 = sphi 0, %s56
      %s74 = sphi 0, %s74
      %s76 = sphi 0, %s74
      %s77 = sphi 0, %s76
      %s91 = sphi 0, %s77
      %s95 = sphi 0, %s95
      %s97 = sphi 0, %s95
      %s98 = sphi 0, %s97
      %s112 = sphi 0, %s98
      %s116 = sphi 0, %s116
      %s118 = sphi 0, %s116
      %s119 = sphi 0, %s118
      %s133 = sphi 0, %s119
      %s139 = sphi 0, %s141
      %s142 = sphi 0, %s139
      %s143 = sphi 0, %s142
      %s159 = sphi 0, %s143
    $region4: #{tpu_custom_call.1} parent=1 // loop_header_branch
      %22 = sbr.rel (%p20) target = $region8
    $region5: #{tpu_custom_call.1} parent=1 // loop_body
      %s24 = ssub.s32 %s19, 1
      %s25 = ssub.s32 %s19, 2
      %s26 = sadd.s32 %s19, 1
      %s27 = ssub.s32 %s19, %s26
      %p28 = scmp.eq.s32.totalorder %s27, 0
      %s30 = sadd.s32 %s29, 1
      %s31 = scalar_select %p28, %s29, %s30
      %p34 = pneg %p28
      %p35 = scmp.eq.s32.totalorder %s19, 2
      %p36 = por %p34, %p35
      %p37 = scmp.ne.s32.totalorder %s29, %s32
      %p38 = scmp.eq.s32.totalorder %s19, 0
      %p39 = por %p37, %p38
      %p40 = scmp.ne.s32.totalorder %s29, %s32
      %p41 = scmp.eq.s32.totalorder %s24, 2
      %p42 = por %p40, %p41
      %p43 = scmp.ne.s32.totalorder %s32, %s33
      %p44 = scmp.eq.s32.totalorder %s24, 0
      %p45 = por %p43, %p44
      %p46 = scmp.ne.s32.totalorder %s32, %s33
      %p47 = scmp.eq.s32.totalorder %s25, 2
      %p48 = por %p46, %p47
      %p50 = scmp.ne.s32.totalorder %s33, %s49
      %p51 = scmp.eq.s32.totalorder %s25, 0
      %p52 = por %p50, %p51
      %s54 = sadd.s32 %s53, 1
      %p57 = scmp.eq.s32.totalorder %s19, 2
      %p58 = scmp.ne.s32.totalorder %s53, %s55
      %p59 = scmp.eq.s32.totalorder %s19, 0
      %p60 = por %p58, %p59
      %p61 = scmp.ne.s32.totalorder %s53, %s55
      %p62 = scmp.eq.s32.totalorder %s24, 2
      %p63 = por %p61, %p62
      %p64 = scmp.ne.s32.totalorder %s55, %s56
      %p65 = scmp.eq.s32.totalorder %s24, 0
      %p66 = por %p64, %p65
      %p67 = scmp.ne.s32.totalorder %s55, %s56
      %p68 = scmp.eq.s32.totalorder %s25, 2
      %p69 = por %p67, %p68
      %p71 = scmp.ne.s32.totalorder %s56, %s70
      %p72 = scmp.eq.s32.totalorder %s25, 0
      %p73 = por %p71, %p72
      %s75 = sadd.s32 %s74, 1
      %p78 = scmp.eq.s32.totalorder %s19, 2
      %p79 = scmp.ne.s32.totalorder %s74, %s76
      %p80 = scmp.eq.s32.totalorder %s19, 0
      %p81 = por %p79, %p80
      %p82 = scmp.ne.s32.totalorder %s74, %s76
      %p83 = scmp.eq.s32.totalorder %s24, 2
      %p84 = por %p82, %p83
      %p85 = scmp.ne.s32.totalorder %s76, %s77
      %p86 = scmp.eq.s32.totalorder %s24, 0
      %p87 = por %p85, %p86
      %p88 = scmp.ne.s32.totalorder %s76, %s77
      %p89 = scmp.eq.s32.totalorder %s25, 2
      %p90 = por %p88, %p89
      %p92 = scmp.ne.s32.totalorder %s77, %s91
      %p93 = scmp.eq.s32.totalorder %s25, 0
      %p94 = por %p92, %p93
      %s96 = sadd.s32 %s95, 1
      %p99 = scmp.eq.s32.totalorder %s19, 2
      %p100 = scmp.ne.s32.totalorder %s95, %s97
      %p101 = scmp.eq.s32.totalorder %s19, 0
      %p102 = por %p100, %p101
      %p103 = scmp.ne.s32.totalorder %s95, %s97
      %p104 = scmp.eq.s32.totalorder %s24, 2
      %p105 = por %p103, %p104
      %p106 = scmp.ne.s32.totalorder %s97, %s98
      %p107 = scmp.eq.s32.totalorder %s24, 0
      %p108 = por %p106, %p107
      %p109 = scmp.ne.s32.totalorder %s97, %s98
      %p110 = scmp.eq.s32.totalorder %s25, 2
      %p111 = por %p109, %p110
      %p113 = scmp.ne.s32.totalorder %s98, %s112
      %p114 = scmp.eq.s32.totalorder %s25, 0
      %p115 = por %p113, %p114
      %s117 = sadd.s32 %s116, 1
      %p120 = scmp.eq.s32.totalorder %s19, 2
      %p121 = scmp.ne.s32.totalorder %s116, %s118
      %p122 = scmp.eq.s32.totalorder %s19, 0
      %p123 = por %p121, %p122
      %p124 = scmp.ne.s32.totalorder %s116, %s118
      %p125 = scmp.eq.s32.totalorder %s24, 2
      %p126 = por %p124, %p125
      %p127 = scmp.ne.s32.totalorder %s118, %s119
      %p128 = scmp.eq.s32.totalorder %s24, 0
      %p129 = por %p127, %p128
      %p130 = scmp.ne.s32.totalorder %s118, %s119
      %p131 = scmp.eq.s32.totalorder %s25, 2
      %p132 = por %p130, %p131
      %p134 = scmp.ne.s32.totalorder %s119, %s133
      %p135 = scmp.eq.s32.totalorder %s25, 0
      %p136 = por %p134, %p135
      %s137 = ssub.s32 %s19, %s26
      %p138 = scmp.eq.s32.totalorder %s137, 0
      %s140 = sadd.s32 %s139, 1
      %s141 = scalar_select %p138, %s139, %s140
      %p144 = pneg %p138
      %p145 = scmp.eq.s32.totalorder %s19, 2
      %p146 = por %p144, %p145
      %p147 = scmp.ne.s32.totalorder %s139, %s142
      %p148 = scmp.eq.s32.totalorder %s19, 0
      %p149 = por %p147, %p148
      %p150 = scmp.ne.s32.totalorder %s139, %s142
      %p151 = scmp.eq.s32.totalorder %s24, 2
      %p152 = por %p150, %p151
      %p153 = scmp.ne.s32.totalorder %s142, %s143
      %p154 = scmp.eq.s32.totalorder %s24, 0
      %p155 = por %p153, %p154
      %p156 = scmp.ne.s32.totalorder %s142, %s143
      %p157 = scmp.eq.s32.totalorder %s25, 2
      %p158 = por %p156, %p157
      %p160 = scmp.ne.s32.totalorder %s143, %s159
      %p161 = scmp.eq.s32.totalorder %s25, 0
      %p162 = por %p160, %p161
      %p163 = scmp.le.s32.totalorder 1, %s19
      %p164 = scmp.lt.s32.totalorder %s19, 4
      %p165 = pnand %p163, %p164
      %p166 = pneg %p165
      // Predicated region
      $region9: #{tpu_custom_call.1} parent=5 // pred_check
        _
      $region10: #{tpu_custom_call.1} parent=5 // pred_check_branch
        %168 = sbr.rel (%p165) target = $region12
      $region11: #{tpu_custom_call.1} parent=5 // pred_region
        %s169 = ssub.s32 %s19, 1
        // Predicated region
        $region13: #{tpu_custom_call.1} parent=11 // pred_check
          %p170 = pneg %p66
        $region14: #{tpu_custom_call.1} parent=11 // pred_check_branch
          %172 = sbr.rel (%p170) target = $region16
        $region15: #{tpu_custom_call.1} parent=11 // pred_region
          %s174 = ssub.s32 48, 48
          %175 = vsyncadd [#allocation6], %s174
          %s177 = sshll.u32 [#allocation5], 4
          %s178 = int_to_ptr.vmem [resolvable:$true] %s177
          %180 = dma.hbm_to_vmem [thread:$0]  %s1, 48, %s178, [#allocation6]
        $region16: #{tpu_custom_call.1} parent=11 // pred_fallthru
          _
        // Predicated region
        $region17: #{tpu_custom_call.1} parent=11 // pred_check
          %p181 = pneg %p87
        $region18: #{tpu_custom_call.1} parent=11 // pred_check_branch
          %183 = sbr.rel (%p181) target = $region20
        $region19: #{tpu_custom_call.1} parent=11 // pred_region
          %s185 = ssub.s32 256, 256
          %186 = vsyncadd [#allocation6], %s185
          %s187 = sshll.u32 [#allocation7], 4
          %s188 = int_to_ptr.vmem [resolvable:$true] %s187
          %193 = dma.hbm_to_vmem [thread:$0]  %s2, 256, %s188, [#allocation6], 64, 64, 4
        $region20: #{tpu_custom_call.1} parent=11 // pred_fallthru
          _
        // Predicated region
        $region21: #{tpu_custom_call.1} parent=11 // pred_check
          %p194 = pneg %p108
        $region22: #{tpu_custom_call.1} parent=11 // pred_check_branch
          %196 = sbr.rel (%p194) target = $region24
        $region23: #{tpu_custom_call.1} parent=11 // pred_region
          %s198 = ssub.s32 1024, 1024
          %199 = vsyncadd [#allocation9], %s198
          %s200 = sshll.u32 [#allocation8], 4
          %s201 = int_to_ptr.vmem [resolvable:$true] %s200
          %206 = dma.hbm_to_vmem [thread:$0]  %s3, 1024, %s201, [#allocation9], 64, 64, 4
        $region24: #{tpu_custom_call.1} parent=11 // pred_fallthru
          _
        // Predicated region
        $region25: #{tpu_custom_call.1} parent=11 // pred_check
          %p207 = pneg %p129
        $region26: #{tpu_custom_call.1} parent=11 // pred_check_branch
          %209 = sbr.rel (%p207) target = $region28
        $region27: #{tpu_custom_call.1} parent=11 // pred_region
          %s211 = ssub.s32 1024, 1024
          %212 = vsyncadd [#allocation9], %s211
          %s213 = sshll.u32 [#allocation10], 4
          %s214 = int_to_ptr.vmem [resolvable:$true] %s213
          %219 = dma.hbm_to_vmem [thread:$0]  %s4, 1024, %s214, [#allocation9], 64, 64, 4
        $region28: #{tpu_custom_call.1} parent=11 // pred_fallthru
          _
      $region12: #{tpu_custom_call.1} parent=5 // pred_fallthru
        _
      %p220 = scmp.lt.s32.totalorder %s19, 3
      // Predicated region
      $region29: #{tpu_custom_call.1} parent=5 // pred_check
        %p221 = pneg %p220
      $region30: #{tpu_custom_call.1} parent=5 // pred_check_branch
        %223 = sbr.rel (%p221) target = $region32
      $region31: #{tpu_custom_call.1} parent=5 // pred_region
        // Predicated region
        $region33: #{tpu_custom_call.1} parent=31 // pred_check
          %p224 = pneg %p39
        $region34: #{tpu_custom_call.1} parent=31 // pred_check_branch
          %226 = sbr.rel (%p224) target = $region36
        $region35: #{tpu_custom_call.1} parent=31 // pred_region
          %s227 = sand.u32 %s29, 1
          %s228 = scalar_lea.sflag [#allocation3], %s227
          %s229 = sand.u32 %s29, 1
          %s230 = smul.addr %s229, 8
          %s231 = scalar_lea.vmem [#allocation2], %s230
          %s233 = ssub.s32 128, 128
          %234 = vsyncadd %s228, %s233
          %s235 = smul.addr %s19, 128
          %s236 = scalar_lea.hbm %s0, %s235
          %s238 = sshll.u32 %s231, 4
          %s239 = int_to_ptr.vmem [resolvable:$true] %s238
          %241 = dma.hbm_to_vmem [thread:$0]  %s236, 128, %s239, %s228
        $region36: #{tpu_custom_call.1} parent=31 // pred_fallthru
          _
      $region32: #{tpu_custom_call.1} parent=5 // pred_fallthru
        _
      %p242 = scmp.le.s32.totalorder 1, %s19
      %p243 = scmp.lt.s32.totalorder %s19, 4
      %p244 = pnand %p242, %p243
      %p245 = pneg %p244
      // Predicated region
      $region37: #{tpu_custom_call.1} parent=5 // pred_check
        _
      $region38: #{tpu_custom_call.1} parent=5 // pred_check_branch
        %247 = sbr.rel (%p244) target = $region40
      $region39: #{tpu_custom_call.1} parent=5 // pred_region
        %s248 = ssub.s32 %s19, 1
        %s249 = sand.u32 %s32, 1
        %s250 = scalar_lea.sflag [#allocation3], %s249
        %s251 = sand.u32 %s32, 1
        %s252 = smul.addr %s251, 8
        %s253 = scalar_lea.vmem [#allocation2], %s252
        // Predicated region
        $region41: #{tpu_custom_call.1} parent=39 // pred_check
          %p254 = pneg %p45
        $region42: #{tpu_custom_call.1} parent=39 // pred_check_branch
          %256 = sbr.rel (%p254) target = $region44
        $region43: #{tpu_custom_call.1} parent=39 // pred_region
          %257 = dma.done %s250, 128
        $region44: #{tpu_custom_call.1} parent=39 // pred_fallthru
          _
        // Predicated region
        $region45: #{tpu_custom_call.1} parent=39 // pred_check
          %p258 = pneg %p66
        $region46: #{tpu_custom_call.1} parent=39 // pred_check_branch
          %260 = sbr.rel (%p258) target = $region48
        $region47: #{tpu_custom_call.1} parent=39 // pred_region
          %261 = dma.done [#allocation6], 48
        $region48: #{tpu_custom_call.1} parent=39 // pred_fallthru
          _
        // Predicated region
        $region49: #{tpu_custom_call.1} parent=39 // pred_check
          %p262 = pneg %p87
        $region50: #{tpu_custom_call.1} parent=39 // pred_check_branch
          %264 = sbr.rel (%p262) target = $region52
        $region51: #{tpu_custom_call.1} parent=39 // pred_region
          %265 = dma.done [#allocation6], 256
        $region52: #{tpu_custom_call.1} parent=39 // pred_fallthru
          _
        // Predicated region
        $region53: #{tpu_custom_call.1} parent=39 // pred_check
          %p266 = pneg %p108
        $region54: #{tpu_custom_call.1} parent=39 // pred_check_branch
          %268 = sbr.rel (%p266) target = $region56
        $region55: #{tpu_custom_call.1} parent=39 // pred_region
          %269 = dma.done [#allocation9], 1024
        $region56: #{tpu_custom_call.1} parent=39 // pred_fallthru
          _
        // Predicated region
        $region57: #{tpu_custom_call.1} parent=39 // pred_check
          %p270 = pneg %p129
        $region58: #{tpu_custom_call.1} parent=39 // pred_check_branch
          %272 = sbr.rel (%p270) target = $region60
        $region59: #{tpu_custom_call.1} parent=39 // pred_region
          %273 = dma.done [#allocation9], 1024
        $region60: #{tpu_custom_call.1} parent=39 // pred_fallthru
          _
        %s274 = sand.u32 %s32, 1
        %s275 = scalar_lea.sflag [#allocation3], %s274
        %s276 = sand.u32 %s32, 1
        %s277 = smul.addr %s276, 8
        %s278 = scalar_lea.vmem [#allocation2], %s277
        %p279 = pneg %p45
        %p280 = pneg %p42
        %p281 = pneg %p66
        %p282 = pneg %p63
        %p283 = pneg %p87
        %p284 = pneg %p84
        %p285 = pneg %p108
        %p286 = pneg %p105
        %p287 = pneg %p129
        %p288 = pneg %p126
        %p289 = pneg %p155
        %p290 = pneg %p152
        %s291 = sand.u32 %s142, 1
        %s292 = scalar_lea.sflag [#allocation4], %s291
        %s293 = sand.u32 %s142, 1
        %s294 = smul.addr %s293, 8
        %s295 = scalar_lea.vmem [#allocation11], %s294
        %v297 = vld [vmem:[%s253] sm:$0xff]
        %v298 = vld [vmem:[#allocation7] sm:$0xf]
        %v299 = vld [vmem:[#allocation7 + $0x4] sm:$0xf]
        %v300 = vld [vmem:[#allocation7 + $0x8] sm:$0xf]
        %v301 = vld [vmem:[#allocation7 + $0xc] sm:$0xf]
        %v302 = vld [vmem:[#allocation5] sm:$0x1]
        %v303 = vpack.c.bf16 %v297, %v297
        %v305 = vlaneseq
        %v306 = vshrl.u32 %v305, 7
        %v307 = vsub.s32 0, %v306
        %v308 = vrot.slane %v302, %v307
        %v314 = vunpack.c.l.b16 %v298
        %v315 = vunpack.c.l.b16 %v299
        %v316 = vunpack.c.l.b16 %v300
        %v317 = vunpack.c.l.b16 %v301
        %v318 = vpack.c.b16 %v315, %v314
        %v319 = vpack.c.b16 %v317, %v316
        %vm322 = vcmask 261120
        %v324 = vsel %vm322, %v303, 0
        %326 = vmatprep.subr.bf16.mxu0 0
        %327 = vmatpush1.bf16.msra.mxu0 0
        %328 = vmatprep.subr.bf16.mxu0 0
        %329 = vmatpush1.bf16.msra.mxu0 0
        %330 = vmatprep.subr.bf16.mxu0 0
        %331 = vmatpush1.bf16.msra.mxu0 0
        %332 = vmatprep.subr.bf16.mxu0 0
        %333 = vmatpush1.bf16.msra.mxu0 0
        %334 = vmatprep.subr.bf16.mxu0 0
        %335 = vmatpush1.bf16.msra.mxu0 0
        %336 = vmatprep.subr.bf16.mxu0 0
        %337 = vmatpush1.bf16.msra.mxu0 0
        %338 = vmatprep.subr.bf16.mxu0 0
        %339 = vmatpush1.bf16.msra.mxu0 %v319
        %340 = vmatprep.subr.bf16.mxu0 0
        %341 = vmatpush1.bf16.msra.mxu0 %v318
        %342 = vmatprep.subr.bf16.mxu0 0
        %343 = vmatpush2.bf16.msra.mxu0 0
        %344 = vmatprep.subr.bf16.mxu0 0
        %345 = vmatpush2.bf16.msra.mxu0 0
        %346 = vmatprep.subr.bf16.mxu0 0
        %347 = vmatpush2.bf16.msra.mxu0 0
        %348 = vmatprep.subr.bf16.mxu0 0
        %349 = vmatpush2.bf16.msra.mxu0 0
        %350 = vmatprep.subr.bf16.mxu0 0
        %351 = vmatpush2.bf16.msra.mxu0 0
        %352 = vmatprep.subr.bf16.mxu0 0
        %353 = vmatpush2.bf16.msra.mxu0 0
        %354 = vmatprep.subr.bf16.mxu0 0
        %355 = vmatpush2.bf16.msra.mxu0 0
        %356 = vmatprep.subr.bf16.mxu0 0
        %357 = vmatpush2.bf16.msra.mxu0 0
        %358 = vmatprep.mubr.bf16.mxu0 0
        %359 = vmatmul.mubr.bf16.gmra.mxu0 %v324
        %v360 = vpop.f32.mrf.mxu0
        %v361 = vadd.f32 %v308, %v360
        %v362 = vpop.f32.mrf.mxu0
        %v363 = vpop.f32.mrf.mxu0
        %v364 = vpop.f32.mrf.mxu0
        %365 = vdwg.mxu0
        %v366 = vmax.f32 %v361, 0.0
        %v367 = vld [vmem:[#allocation8] sm:$0xf]
        %v368 = vld [vmem:[#allocation8 + $0x4] sm:$0xf]
        %v369 = vld [vmem:[#allocation8 + $0x8] sm:$0xf]
        %v370 = vld [vmem:[#allocation8 + $0xc] sm:$0xf]
        %v371 = vld [vmem:[#allocation8 + $0x10] sm:$0xf]
        %v372 = vld [vmem:[#allocation8 + $0x14] sm:$0xf]
        %v373 = vld [vmem:[#allocation8 + $0x18] sm:$0xf]
        %v374 = vld [vmem:[#allocation8 + $0x1c] sm:$0xf]
        %v375 = vld [vmem:[#allocation8 + $0x20] sm:$0xf]
        %v376 = vld [vmem:[#allocation8 + $0x24] sm:$0xf]
        %v377 = vld [vmem:[#allocation8 + $0x28] sm:$0xf]
        %v378 = vld [vmem:[#allocation8 + $0x2c] sm:$0xf]
        %v379 = vld [vmem:[#allocation8 + $0x30] sm:$0xf]
        %v380 = vld [vmem:[#allocation8 + $0x34] sm:$0xf]
        %v381 = vld [vmem:[#allocation8 + $0x38] sm:$0xf]
        %v382 = vld [vmem:[#allocation8 + $0x3c] sm:$0xf]
        %v383 = vld [vmem:[#allocation5 + $0x1] sm:$0x1]
        %v384 = vpack.c.bf16 %v366, %v366
        %v386 = vlaneseq
        %v387 = vshrl.u32 %v386, 7
        %v388 = vsub.s32 0, %v387
        %v389 = vrot.slane %v383, %v388
        %v407 = vunpack.c.l.b16 %v367
        %v408 = vunpack.c.l.b16 %v368
        %v409 = vunpack.c.l.b16 %v369
        %v410 = vunpack.c.l.b16 %v370
        %v411 = vunpack.c.l.b16 %v371
        %v412 = vunpack.c.l.b16 %v372
        %v413 = vunpack.c.l.b16 %v373
        %v414 = vunpack.c.l.b16 %v374
        %v415 = vunpack.c.l.b16 %v375
        %v416 = vunpack.c.l.b16 %v376
        %v417 = vunpack.c.l.b16 %v377
        %v418 = vunpack.c.l.b16 %v378
        %v419 = vunpack.c.l.b16 %v379
        %v420 = vunpack.c.l.b16 %v380
        %v421 = vunpack.c.l.b16 %v381
        %v422 = vunpack.c.l.b16 %v382
        %v423 = vpack.c.b16 %v408, %v407
        %v424 = vpack.c.b16 %v410, %v409
        %v425 = vpack.c.b16 %v412, %v411
        %v426 = vpack.c.b16 %v414, %v413
        %v427 = vpack.c.b16 %v416, %v415
        %v428 = vpack.c.b16 %v418, %v417
        %v429 = vpack.c.b16 %v420, %v419
        %v430 = vpack.c.b16 %v422, %v421
        %439 = vmatprep.subr.bf16.mxu0 0
        %440 = vmatpush1.bf16.msra.mxu0 %v430
        %441 = vmatprep.subr.bf16.mxu0 0
        %442 = vmatpush1.bf16.msra.mxu0 %v429
        %443 = vmatprep.subr.bf16.mxu0 0
        %444 = vmatpush1.bf16.msra.mxu0 %v428
        %445 = vmatprep.subr.bf16.mxu0 0
        %446 = vmatpush1.bf16.msra.mxu0 %v427
        %447 = vmatprep.subr.bf16.mxu0 0
        %448 = vmatpush1.bf16.msra.mxu0 %v426
        %449 = vmatprep.subr.bf16.mxu0 0
        %450 = vmatpush1.bf16.msra.mxu0 %v425
        %451 = vmatprep.subr.bf16.mxu0 0
        %452 = vmatpush1.bf16.msra.mxu0 %v424
        %453 = vmatprep.subr.bf16.mxu0 0
        %454 = vmatpush1.bf16.msra.mxu0 %v423
        %455 = vmatprep.subr.bf16.mxu0 0
        %456 = vmatpush2.bf16.msra.mxu0 0
        %457 = vmatprep.subr.bf16.mxu0 0
        %458 = vmatpush2.bf16.msra.mxu0 0
        %459 = vmatprep.subr.bf16.mxu0 0
        %460 = vmatpush2.bf16.msra.mxu0 0
        %461 = vmatprep.subr.bf16.mxu0 0
        %462 = vmatpush2.bf16.msra.mxu0 0
        %463 = vmatprep.subr.bf16.mxu0 0
        %464 = vmatpush2.bf16.msra.mxu0 0
        %465 = vmatprep.subr.bf16.mxu0 0
        %466 = vmatpush2.bf16.msra.mxu0 0
        %467 = vmatprep.subr.bf16.mxu0 0
        %468 = vmatpush2.bf16.msra.mxu0 0
        %469 = vmatprep.subr.bf16.mxu0 0
        %470 = vmatpush2.bf16.msra.mxu0 0
        %471 = vmatprep.mubr.bf16.mxu0 0
        %472 = vmatmul.mubr.bf16.gmra.mxu0 %v384
        %v473 = vpop.f32.mrf.mxu0
        %v474 = vadd.f32 %v389, %v473
        %v475 = vpop.f32.mrf.mxu0
        %v476 = vpop.f32.mrf.mxu0
        %v477 = vpop.f32.mrf.mxu0
        %478 = vdwg.mxu0
        %v479 = vmax.f32 %v474, 0.0
        %v480 = vld [vmem:[#allocation10] sm:$0xf]
        %v481 = vld [vmem:[#allocation10 + $0x4] sm:$0xf]
        %v482 = vld [vmem:[#allocation10 + $0x8] sm:$0xf]
        %v483 = vld [vmem:[#allocation10 + $0xc] sm:$0xf]
        %v484 = vld [vmem:[#allocation10 + $0x10] sm:$0xf]
        %v485 = vld [vmem:[#allocation10 + $0x14] sm:$0xf]
        %v486 = vld [vmem:[#allocation10 + $0x18] sm:$0xf]
        %v487 = vld [vmem:[#allocation10 + $0x1c] sm:$0xf]
        %v488 = vld [vmem:[#allocation10 + $0x20] sm:$0xf]
        %v489 = vld [vmem:[#allocation10 + $0x24] sm:$0xf]
        %v490 = vld [vmem:[#allocation10 + $0x28] sm:$0xf]
        %v491 = vld [vmem:[#allocation10 + $0x2c] sm:$0xf]
        %v492 = vld [vmem:[#allocation10 + $0x30] sm:$0xf]
        %v493 = vld [vmem:[#allocation10 + $0x34] sm:$0xf]
        %v494 = vld [vmem:[#allocation10 + $0x38] sm:$0xf]
        %v495 = vld [vmem:[#allocation10 + $0x3c] sm:$0xf]
        %v496 = vld [vmem:[#allocation5 + $0x2] sm:$0x1]
        %v497 = vpack.c.bf16 %v479, %v479
        %v499 = vlaneseq
        %v500 = vshrl.u32 %v499, 7
        %v501 = vsub.s32 0, %v500
        %v502 = vrot.slane %v496, %v501
        %v520 = vunpack.c.l.b16 %v480
        %v521 = vunpack.c.l.b16 %v481
        %v522 = vunpack.c.l.b16 %v482
        %v523 = vunpack.c.l.b16 %v483
        %v524 = vunpack.c.l.b16 %v484
        %v525 = vunpack.c.l.b16 %v485
        %v526 = vunpack.c.l.b16 %v486
        %v527 = vunpack.c.l.b16 %v487
        %v528 = vunpack.c.l.b16 %v488
        %v529 = vunpack.c.l.b16 %v489
        %v530 = vunpack.c.l.b16 %v490
        %v531 = vunpack.c.l.b16 %v491
        %v532 = vunpack.c.l.b16 %v492
        %v533 = vunpack.c.l.b16 %v493
        %v534 = vunpack.c.l.b16 %v494
        %v535 = vunpack.c.l.b16 %v495
        %v536 = vpack.c.b16 %v521, %v520
        %v537 = vpack.c.b16 %v523, %v522
        %v538 = vpack.c.b16 %v525, %v524
        %v539 = vpack.c.b16 %v527, %v526
        %v540 = vpack.c.b16 %v529, %v528
        %v541 = vpack.c.b16 %v531, %v530
        %v542 = vpack.c.b16 %v533, %v532
        %v543 = vpack.c.b16 %v535, %v534
        %552 = vmatprep.subr.bf16.mxu0 0
        %553 = vmatpush1.bf16.msra.mxu0 %v543
        %554 = vmatprep.subr.bf16.mxu0 0
        %555 = vmatpush1.bf16.msra.mxu0 %v542
        %556 = vmatprep.subr.bf16.mxu0 0
        %557 = vmatpush1.bf16.msra.mxu0 %v541
        %558 = vmatprep.subr.bf16.mxu0 0
        %559 = vmatpush1.bf16.msra.mxu0 %v540
        %560 = vmatprep.subr.bf16.mxu0 0
        %561 = vmatpush1.bf16.msra.mxu0 %v539
        %562 = vmatprep.subr.bf16.mxu0 0
        %563 = vmatpush1.bf16.msra.mxu0 %v538
        %564 = vmatprep.subr.bf16.mxu0 0
        %565 = vmatpush1.bf16.msra.mxu0 %v537
        %566 = vmatprep.subr.bf16.mxu0 0
        %567 = vmatpush1.bf16.msra.mxu0 %v536
        %568 = vmatprep.subr.bf16.mxu0 0
        %569 = vmatpush2.bf16.msra.mxu0 0
        %570 = vmatprep.subr.bf16.mxu0 0
        %571 = vmatpush2.bf16.msra.mxu0 0
        %572 = vmatprep.subr.bf16.mxu0 0
        %573 = vmatpush2.bf16.msra.mxu0 0
        %574 = vmatprep.subr.bf16.mxu0 0
        %575 = vmatpush2.bf16.msra.mxu0 0
        %576 = vmatprep.subr.bf16.mxu0 0
        %577 = vmatpush2.bf16.msra.mxu0 0
        %578 = vmatprep.subr.bf16.mxu0 0
        %579 = vmatpush2.bf16.msra.mxu0 0
        %580 = vmatprep.subr.bf16.mxu0 0
        %581 = vmatpush2.bf16.msra.mxu0 0
        %582 = vmatprep.subr.bf16.mxu0 0
        %583 = vmatpush2.bf16.msra.mxu0 0
        %584 = vmatprep.mubr.bf16.mxu0 0
        %585 = vmatmul.mubr.bf16.gmra.mxu0 %v497
        %v586 = vpop.f32.mrf.mxu0
        %v587 = vadd.f32 %v502, %v586
        %v588 = vpop.f32.mrf.mxu0
        %v589 = vpop.f32.mrf.mxu0
        %v590 = vpop.f32.mrf.mxu0
        %591 = vdwg.mxu0
        %592 = vst [vmem:[%s295] sm:$0xff] %v587
        %s593 = sand.u32 %s142, 1
        %s594 = scalar_lea.sflag [#allocation4], %s593
        %s595 = sand.u32 %s142, 1
        %s596 = smul.addr %s595, 8
        %s597 = scalar_lea.vmem [#allocation11], %s596
        // Predicated region
        $region61: #{tpu_custom_call.1} parent=39 // pred_check
          %p598 = pneg %p152
        $region62: #{tpu_custom_call.1} parent=39 // pred_check_branch
          %600 = sbr.rel (%p598) target = $region64
        $region63: #{tpu_custom_call.1} parent=39 // pred_region
          %s602 = ssub.s32 128, 128
          %603 = vsyncadd %s594, %s602
          %s604 = smul.addr %s24, 128
          %s605 = scalar_lea.hbm %s5, %s604
          %s607 = sshll.u32 %s597, 4
          %s608 = int_to_ptr.vmem [resolvable:$true] %s607
          %610 = dma.vmem_to_hbm [thread:$0]  %s608, 128, %s605, %s594
        $region64: #{tpu_custom_call.1} parent=39 // pred_fallthru
          _
      $region40: #{tpu_custom_call.1} parent=5 // pred_fallthru
        _
      %p611 = scmp.le.s32.totalorder 2, %s19
      // Predicated region
      $region65: #{tpu_custom_call.1} parent=5 // pred_check
        %p612 = pneg %p611
      $region66: #{tpu_custom_call.1} parent=5 // pred_check_branch
        %614 = sbr.rel (%p612) target = $region68
      $region67: #{tpu_custom_call.1} parent=5 // pred_region
        %s615 = ssub.s32 %s19, 2
        // Predicated region
        $region69: #{tpu_custom_call.1} parent=67 // pred_check
          %p616 = pneg %p158
        $region70: #{tpu_custom_call.1} parent=67 // pred_check_branch
          %618 = sbr.rel (%p616) target = $region72
        $region71: #{tpu_custom_call.1} parent=67 // pred_region
          %s619 = sand.u32 %s143, 1
          %s620 = scalar_lea.sflag [#allocation4], %s619
          %s621 = sand.u32 %s143, 1
          %s622 = smul.addr %s621, 8
          %s623 = scalar_lea.vmem [#allocation11], %s622
          %624 = dma.done %s620, 128
        $region72: #{tpu_custom_call.1} parent=67 // pred_fallthru
          _
      $region68: #{tpu_custom_call.1} parent=5 // pred_fallthru
        _
    $region6: #{tpu_custom_call.1} parent=1 // loop_footer
      %s23 = sadd.s32 1, %s19
    $region7: #{tpu_custom_call.1} parent=1 // loop_footer_branch
      %18 = sbr.rel target = $region3
    $region8: #{tpu_custom_call.1} parent=1 // loop_exit
      _
    %625 = vsyncpa [#allocation3], 1
    %s626 = scalar_lea.sflag [#allocation3], 1
    %627 = vsyncpa %s626, 1
    %628 = vsyncpa [#allocation6], 1
    %629 = vsyncpa [#allocation9], 1
    %630 = vsyncpa [#allocation4], 1
    %s631 = scalar_lea.sflag [#allocation4], 1
    %632 = vsyncpa %s631, 1

</llo_original>
